<compile_context>
chip_gen: v7x
topology: tpu7x:2x2x1
jax: 0.10.0
libtpu: 0.0.40
codegen_flags: <defaults>
</compile_context>

<pallas_src>
import datetime

import jax
import jax.numpy as jnp
import numpy as np
from jax import lax
from jax.experimental import pallas as pl
from jax.experimental.pallas import tpu as pltpu

K_HALF = 32           # k1 == k2 == 32  ->  64-dim embedding per timestamp
IN_FEATS = 6          # [hour, minute, second, year, month, day]
DEFAULT_TILE = 8192   # timestamp-pairs per block (rows of the 128-lane output)


def _d2v_kernel(x_ref, w_ref, b_ref, o_ref):
    """y = x @ W + b; apply sin on lanes with (lane % 64) >= 32.

    x_ref: (TILE, 12)   two packed timestamps per row
    w_ref: (12, 128)    block_diag(concat([W1, W2], 1), concat([W1, W2], 1))
    b_ref: (1, 128)     concat([b1, b2, b1, b2])
    o_ref: (TILE, 128)  [embed(ts_2r), embed(ts_2r+1)] per row
    """
    y = jnp.dot(x_ref[...], w_ref[...],
                preferred_element_type=jnp.float32) + b_ref[...]
    lane = lax.broadcasted_iota(jnp.int32, y.shape, dimension=1)
    o_ref[...] = jnp.where((lane % 64) >= K_HALF, jnp.sin(y), y)


def date2vec_embed(x, w1, b1, w2, b2, *, tile_pairs=DEFAULT_TILE):
    """x: (N, 6) float32 -> (N, 64) float32 embedding.

    concat([x @ W1 + b1, sin(x @ W2 + b2)], axis=-1), computed with a gridded,
    lane-dense (128-wide) Pallas kernel.
    """
    n, d = x.shape
    k = w1.shape[1]

    # Fuse the two linears once in the wrapper (hoisted out of the kernel).
    w_fused = jnp.concatenate([w1, w2], axis=1)                   # (6, 64)
    b_fused = jnp.concatenate([b1.reshape(-1), b2.reshape(-1)])   # (64,)

    # Lane-dense packing: two timestamps per kernel row -> 128-lane output.
    zeros = jnp.zeros_like(w_fused)
    w_wide = jnp.block([[w_fused, zeros], [zeros, w_fused]])      # (12, 128)
    b_wide = jnp.concatenate([b_fused, b_fused]).reshape(1, 4 * k)  # (1, 128)

    # Pad timestamps to an even count, then pairs up to a multiple of the tile.
    n_even = ((n + 1) // 2) * 2
    n_pairs = n_even // 2
    tile = min(tile_pairs, max(8, ((n_pairs + 7) // 8) * 8))      # multiple of 8
    n_pairs_pad = pl.cdiv(n_pairs, tile) * tile

    x_pad = jnp.zeros((2 * n_pairs_pad, d), jnp.float32).at[:n].set(x)
    x_packed = x_pad.reshape(n_pairs_pad, 2 * d)                  # (pairs, 12)

    out = pl.pallas_call(
        _d2v_kernel,
        out_shape=jax.ShapeDtypeStruct((n_pairs_pad, 4 * k), jnp.float32),
        grid=(n_pairs_pad // tile,),
        in_specs=[
            pl.BlockSpec((tile, 2 * d), lambda i: (i, 0)),   # packed features
            pl.BlockSpec((2 * d, 4 * k), lambda i: (0, 0)),  # resident weight
            pl.BlockSpec((1, 4 * k), lambda i: (0, 0)),      # resident bias
        ],
        out_specs=pl.BlockSpec((tile, 4 * k), lambda i: (i, 0)),
        compiler_params=pltpu.CompilerParams(
            dimension_semantics=("parallel",),
        ),
    )(x_packed, w_wide, b_wide)

    # Unpack (pairs, 128) -> (2*pairs, 64) and drop padded rows.
    return out.reshape(2 * n_pairs_pad, 2 * k)[:n]


def timestamps_to_features(timestamps):
    """Host-side glue: unix timestamp -> [hour, minute, second, year, month, day].

    # TODO(synk): original module uses local-timezone fromtimestamp; we use UTC
    # here for deterministic, machine-independent results.
    """
    feats = []
    for ts in timestamps:
        t = datetime.datetime.fromtimestamp(int(ts), tz=datetime.timezone.utc)
        feats.append([t.hour, t.minute, t.second, t.year, t.month, t.day])
    return np.asarray(feats, dtype=np.float32)


if __name__ == "__main__":
    key = jax.random.PRNGKey(0)
    k_ts, k_w1, k_b1, k_w2, k_b2 = jax.random.split(key, 5)

    # Deterministic synthetic parameters (shapes from Date2Vec k=64: Linear(6,32) x2).
    w1 = jax.random.normal(k_w1, (IN_FEATS, K_HALF), dtype=jnp.float32) * 0.1
    b1 = jax.random.normal(k_b1, (K_HALF,), dtype=jnp.float32) * 0.1
    w2 = jax.random.normal(k_w2, (IN_FEATS, K_HALF), dtype=jnp.float32) * 0.1
    b2 = jax.random.normal(k_b2, (K_HALF,), dtype=jnp.float32) * 0.1

    # Deterministic example input: a small sequence of unix timestamps.
    n_seq = 8
    timestamps = jax.random.randint(
        k_ts, (n_seq,), minval=1_500_000_000, maxval=1_700_000_000, dtype=jnp.int32
    )
    x_np = timestamps_to_features(np.asarray(timestamps))        # (8, 6) float32
    x = jnp.asarray(x_np)

    out = date2vec_embed(x, w1, b1, w2, b2)
    out = jax.block_until_ready(out)

    # Pure-JAX reference check of the encode() semantics.
    ref = jnp.concatenate([x @ w1 + b1, jnp.sin(x @ w2 + b2)], axis=-1)
    np.testing.assert_allclose(np.asarray(out), np.asarray(ref), rtol=1e-5, atol=1e-5)
    assert out.shape == (n_seq, 2 * K_HALF)

    # Odd-length batch exercises the pair/tile padding path.
    x_odd = x[:7]
    out_odd = jax.block_until_ready(date2vec_embed(x_odd, w1, b1, w2, b2))
    ref_odd = jnp.concatenate([x_odd @ w1 + b1, jnp.sin(x_odd @ w2 + b2)], axis=-1)
    np.testing.assert_allclose(np.asarray(out_odd), np.asarray(ref_odd),
                               rtol=1e-5, atol=1e-5)
    assert out_odd.shape == (7, 2 * K_HALF)

    print("KERNEL_OK")
</pallas_src>

<mosaic_0001>
module attributes {stable_mosaic.version = 11 : i64} {
  func.func @_d2v_kernel(%arg0: i32, %arg1: memref<8x12xf32, #tpu.memory_space<vmem>>, %arg2: memref<12x128xf32, #tpu.memory_space<vmem>>, %arg3: memref<1x128xf32, #tpu.memory_space<vmem>>, %arg4: memref<8x128xf32, #tpu.memory_space<vmem>>) attributes {dimension_semantics = [#tpu.dimension_semantics<parallel>], iteration_bounds = array<i64: 1>, scalar_prefetch = 0 : i64, scratch_operands = 0 : i64, tpu.core_type = #tpu.core_type<tc>, window_params = [{transform_indices = @transform_0, window_bounds = array<i64: 8, 12>}, {pipeline_mode = #tpu.pipeline_mode<synchronous>, transform_indices = @transform_1, window_bounds = array<i64: 12, 128>}, {pipeline_mode = #tpu.pipeline_mode<synchronous>, transform_indices = @transform_2, window_bounds = array<i64: 1, 128>}, {transform_indices = @transform_3, window_bounds = array<i64: 8, 128>}]} {
    %c0 = arith.constant 0 : index
    %c0_0 = arith.constant 0 : index
    %0 = vector.load %arg1[%c0, %c0_0] : memref<8x12xf32, #tpu.memory_space<vmem>>, vector<8x12xf32>
    %c0_1 = arith.constant 0 : index
    %c0_2 = arith.constant 0 : index
    %1 = vector.load %arg2[%c0_1, %c0_2] : memref<12x128xf32, #tpu.memory_space<vmem>>, vector<12x128xf32>
    %cst = arith.constant dense<0.000000e+00> : vector<8x128xf32>
    %2 = tpu.matmul %0, %1, %cst {dimension_numbers = #tpu.dot_dimension_numbers<[1], [0], [0], [1], [0, 0, 1, 1], [], []>} : vector<8x12xf32>, vector<12x128xf32>, vector<8x128xf32> -> vector<8x128xf32>
    %c0_3 = arith.constant 0 : index
    %c0_4 = arith.constant 0 : index
    %3 = vector.load %arg3[%c0_3, %c0_4] : memref<1x128xf32, #tpu.memory_space<vmem>>, vector<1x128xf32>
    %4 = vector.broadcast %3 : vector<1x128xf32> to vector<8x128xf32>
    %5 = arith.addf %2, %4 : vector<8x128xf32>
    %6 = tpu.iota {dimensions = array<i32: 1>} : vector<8x128xi32>
    %c64_i32 = arith.constant 64 : i32
    %c0_i32 = arith.constant 0 : i32
    %7 = arith.cmpi eq, %c64_i32, %c0_i32 : i32
    %c1_i32 = arith.constant 1 : i32
    %8 = arith.select %7, %c1_i32, %c64_i32 : i32
    %9 = vector.broadcast %8 : i32 to vector<8x128xi32>
    %10 = arith.remsi %6, %9 : vector<8x128xi32>
    %c0_i32_5 = arith.constant 0 : i32
    %11 = vector.broadcast %c0_i32_5 : i32 to vector<8x128xi32>
    %12 = arith.cmpi ne, %10, %11 : vector<8x128xi32>
    %c0_i32_6 = arith.constant 0 : i32
    %13 = vector.broadcast %c0_i32_6 : i32 to vector<8x128xi32>
    %14 = arith.cmpi slt, %10, %13 : vector<8x128xi32>
    %c0_i32_7 = arith.constant 0 : i32
    %15 = arith.cmpi slt, %8, %c0_i32_7 : i32
    %16 = vector.broadcast %15 : i1 to vector<8x128xi1>
    %17 = vector.broadcast %16 : vector<8x128xi1> to vector<8x128xi1>
    %18 = arith.xori %14, %17 : vector<8x128xi1>
    %19 = arith.andi %18, %12 : vector<8x128xi1>
    %20 = vector.broadcast %8 : i32 to vector<8x128xi32>
    %21 = arith.addi %10, %20 : vector<8x128xi32>
    %22 = arith.select %19, %21, %10 : vector<8x128xi1>, vector<8x128xi32>
    %c32_i32 = arith.constant 32 : i32
    %23 = vector.broadcast %c32_i32 : i32 to vector<8x128xi32>
    %24 = arith.cmpi sge, %22, %23 : vector<8x128xi32>
    %25 = math.sin %5 : vector<8x128xf32>
    %26 = arith.select %24, %25, %5 : vector<8x128xi1>, vector<8x128xf32>
    %c0_8 = arith.constant 0 : index
    %c0_9 = arith.constant 0 : index
    %27 = vector.load %arg4[%c0_8, %c0_9] : memref<8x128xf32, #tpu.memory_space<vmem>>, vector<8x128xf32>
    tpu.vector_store %arg4[%c0_8, %c0_9], %26 {strides = array<i32>} : memref<8x128xf32, #tpu.memory_space<vmem>>, vector<8x128xf32>,
    return
  }
  func.func @transform_0(%arg0: i32) -> (i32, i32) {
    %c0_i32 = arith.constant 0 : i32
    %c0_i32_0 = arith.constant 0 : i32
    return %arg0, %c0_i32 : i32, i32
  }
  func.func @transform_1(%arg0: i32) -> (i32, i32) {
    %c0_i32 = arith.constant 0 : i32
    %c0_i32_0 = arith.constant 0 : i32
    %c0_i32_1 = arith.constant 0 : i32
    return %c0_i32, %c0_i32_0 : i32, i32
  }
  func.func @transform_2(%arg0: i32) -> (i32, i32) {
    %c0_i32 = arith.constant 0 : i32
    %c0_i32_0 = arith.constant 0 : i32
    %c0_i32_1 = arith.constant 0 : i32
    return %c0_i32, %c0_i32_0 : i32, i32
  }
  func.func @transform_3(%arg0: i32) -> (i32, i32) {
    %c0_i32 = arith.constant 0 : i32
    %c0_i32_0 = arith.constant 0 : i32
    return %arg0, %c0_i32 : i32, i32
  }
}

</mosaic_0001>

<llo_original>
// kernel: tpu_custom_call.1
$region0: #{tpu_custom_call.1}
  #allocation0 [shape = 'u32[]', space=smem, size = 0x4, offset = 0x4, fixed_abs, tag = 'smem constant byte address 0x4 - core index']
  #allocation1 [shape = 'u32[144,128]{1,0:T(1,128)}', space=vmem, size = 0x12000, scoped, tag = 'internal scratch']
  %s0 = inlined_call_operand.hbm [shape: f32[8,12], index: 0, kind: input, shape index: {}]
  %s1 = inlined_call_operand.hbm [shape: f32[12,128], index: 1, kind: input, shape index: {}]
  %s2 = inlined_call_operand.vmem [shape: f32[1,128], index: 2, kind: input, shape index: {}]
  %s3 = inlined_call_operand.hbm [shape: f32[8,128], index: 3, kind: output, shape index: {}]
  %s4 = sld [smem:[#allocation0]]
  $region30: #{tpu_custom_call.1} parent=0
    _
  %s6 = ssub.s32 1, %s4
  %s7 = scalar_select 0, %s6, %s4
  $region1: #{tpu_custom_call.1} parent=0
    #allocation2 [shape = 'u8[4096]{0}', space=vmem, size = 0x1000, scoped, tag = 'input window, operand 0, single buffered']
    #allocation3 [shape = 's32[1]{0}', space=sflag, size = 0x4, scoped, tag = 'scoped memory for tpu_custom_call.1']
    #allocation4 [shape = 's32[1]{0}', space=sflag, size = 0x4, scoped, tag = 'scoped memory for tpu_custom_call.1']
    #allocation5 [shape = 'u8[8192]{0}', space=vmem, size = 0x2000, scoped, tag = 'input window, operand 1, single buffered']
    #allocation6 [shape = 's32[1]{0}', space=sflag, size = 0x4, scoped, tag = 'scoped memory for tpu_custom_call.1']
    #allocation7 [shape = 'u8[4096]{0}', space=vmem, size = 0x1000, scoped, tag = 'output window, operand 0, single buffered']
    %8 = vsyncpa [#allocation3], 0
    %9 = vsyncpa [#allocation6], 0
    %10 = vsyncpa [#allocation4], 0
    // Predicated region
    $region2: #{tpu_custom_call.1} parent=1 // pred_check
      _
    $region3: #{tpu_custom_call.1} parent=1 // pred_check_branch
      %12 = sbr.rel (0) target = $region5
    $region4: #{tpu_custom_call.1} parent=1 // pred_region
      %s14 = ssub.s32 128, 128
      %15 = vsyncadd [#allocation3], %s14
      %s17 = sshll.u32 [#allocation2], 4
      %s18 = int_to_ptr.vmem [resolvable:$true] %s17
      %20 = dma.hbm_to_vmem [thread:$0]  %s0, 128, %s18, [#allocation3]
    $region5: #{tpu_custom_call.1} parent=1 // pred_fallthru
      _
    // Predicated region
    $region6: #{tpu_custom_call.1} parent=1 // pred_check
      _
    $region7: #{tpu_custom_call.1} parent=1 // pred_check_branch
      %22 = sbr.rel (0) target = $region9
    $region8: #{tpu_custom_call.1} parent=1 // pred_region
      %s24 = ssub.s32 256, 256
      %25 = vsyncadd [#allocation6], %s24
      %s26 = sshll.u32 [#allocation5], 4
      %s27 = int_to_ptr.vmem [resolvable:$true] %s26
      %32 = dma.hbm_to_vmem [thread:$0]  %s1, 256, %s27, [#allocation6], 128, 128, 8
    $region9: #{tpu_custom_call.1} parent=1 // pred_fallthru
      _
    // Predicated region
    $region10: #{tpu_custom_call.1} parent=1 // pred_check
      _
    $region11: #{tpu_custom_call.1} parent=1 // pred_check_branch
      %34 = sbr.rel (0) target = $region13
    $region12: #{tpu_custom_call.1} parent=1 // pred_region
      _
    $region13: #{tpu_custom_call.1} parent=1 // pred_fallthru
      _
    // Predicated region
    $region14: #{tpu_custom_call.1} parent=1 // pred_check
      _
    $region15: #{tpu_custom_call.1} parent=1 // pred_check_branch
      %36 = sbr.rel (0) target = $region17
    $region16: #{tpu_custom_call.1} parent=1 // pred_region
      %37 = dma.done [#allocation3], 128
    $region17: #{tpu_custom_call.1} parent=1 // pred_fallthru
      _
    // Predicated region
    $region18: #{tpu_custom_call.1} parent=1 // pred_check
      _
    $region19: #{tpu_custom_call.1} parent=1 // pred_check_branch
      %39 = sbr.rel (0) target = $region21
    $region20: #{tpu_custom_call.1} parent=1 // pred_region
      %40 = dma.done [#allocation6], 256
    $region21: #{tpu_custom_call.1} parent=1 // pred_fallthru
      _
    %v41 = vld [vmem:[#allocation2] sm:$0xff]
    %v42 = vld [vmem:[#allocation5] sm:$0xff]
    %v43 = vld [vmem:[#allocation5 + $0x8] sm:$0xf]
    %v44 = vld [vmem:[%s2] sm:$0x1]
    %v46 = vlaneseq
    %v47 = vshrl.u32 %v46, 7
    %v48 = vsub.s32 0, %v47
    %v49 = vrot.slane %v44, %v48
    %vm51 = vcmask 97280
    %v53 = vsel %vm51, %v41, 0
    %vm55 = vcmask 1043456
    %v57 = vsel %vm55, %v43, 0
    %59 = vmatprep.subr.mxu0 0.0
    %60 = vmatpush1.msra.mxu0 %v42
    %61 = vmatprep.subr.mxu0 0.0
    %62 = vmatpush1.msra.mxu0 %v57
    %63 = vmatprep.subr.mxu0 0.0
    %64 = vmatpush1.msra.mxu0 0.0
    %65 = vmatprep.subr.mxu0 0.0
    %66 = vmatpush1.msra.mxu0 0.0
    %67 = vmatprep.subr.mxu0 0.0
    %68 = vmatpush1.msra.mxu0 0.0
    %69 = vmatprep.subr.mxu0 0.0
    %70 = vmatpush1.msra.mxu0 0.0
    %71 = vmatprep.subr.mxu0 0.0
    %72 = vmatpush1.msra.mxu0 0.0
    %73 = vmatprep.subr.mxu0 0.0
    %74 = vmatpush1.msra.mxu0 0.0
    %75 = vmatprep.subr.mxu0 0.0
    %76 = vmatpush1.msra.mxu0 0.0
    %77 = vmatprep.subr.mxu0 0.0
    %78 = vmatpush1.msra.mxu0 0.0
    %79 = vmatprep.subr.mxu0 0.0
    %80 = vmatpush1.msra.mxu0 0.0
    %81 = vmatprep.subr.mxu0 0.0
    %82 = vmatpush1.msra.mxu0 0.0
    %83 = vmatprep.subr.mxu0 0.0
    %84 = vmatpush1.msra.mxu0 0.0
    %85 = vmatprep.subr.mxu0 0.0
    %86 = vmatpush1.msra.mxu0 0.0
    %87 = vmatprep.subr.mxu0 0.0
    %88 = vmatpush1.msra.mxu0 0.0
    %89 = vmatprep.subr.mxu0 0.0
    %90 = vmatpush1.msra.mxu0 0.0
    %91 = vmatprep.subr.mxu0 0.0
    %92 = vmatpush1.msra.mxu0 0.0
    %93 = vmatprep.subr.mxu0 0.0
    %94 = vmatpush1.msra.mxu0 0.0
    %95 = vmatprep.subr.mxu0 0.0
    %96 = vmatpush1.msra.mxu0 0.0
    %97 = vmatprep.subr.mxu0 0.0
    %98 = vmatpush1.msra.mxu0 0.0
    %99 = vmatprep.subr.mxu0 0.0
    %100 = vmatpush1.msra.mxu0 0.0
    %101 = vmatprep.subr.mxu0 0.0
    %102 = vmatpush1.msra.mxu0 0.0
    %103 = vmatprep.subr.mxu0 0.0
    %104 = vmatpush1.msra.mxu0 0.0
    %105 = vmatprep.subr.mxu0 0.0
    %106 = vmatpush1.msra.mxu0 0.0
    %107 = vmatprep.subr.mxu0 0.0
    %108 = vmatpush1.msra.mxu0 0.0
    %109 = vmatprep.subr.mxu0 0.0
    %110 = vmatpush1.msra.mxu0 0.0
    %111 = vmatprep.subr.mxu0 0.0
    %112 = vmatpush1.msra.mxu0 0.0
    %113 = vmatprep.subr.mxu0 0.0
    %114 = vmatpush1.msra.mxu0 0.0
    %115 = vmatprep.subr.mxu0 0.0
    %116 = vmatpush1.msra.mxu0 0.0
    %117 = vmatprep.subr.mxu0 0.0
    %118 = vmatpush1.msra.mxu0 0.0
    %119 = vmatprep.subr.mxu0 0.0
    %120 = vmatpush1.msra.mxu0 0.0
    %121 = vmatprep.subr.mxu0 0.0
    %122 = vmatpush1.msra.mxu0 0.0
    %123 = vmatprep.mubr.f32.mxu0 0.0
    %124 = vmatmul.mubr.f32.gmra.mrb[0].mxu0 %v53
    %v125 = vpop.f32.mrb[0].mxu0
    %v126 = vadd.f32 %v49, %v125
    %v127 = vpop.f32.mrb[0].mxu0
    %128 = vdwg.mxu0
    %v129 = vlaneseq
    %v130 = vand.u32 %v129, 127
    %vm131 = vcmp.lt.s32.totalorder %v130, 0
    %v132 = vsub.s32 0, %v130
    %v133 = vsel %vm131, %v132, %v130
    %v134 = vshrl.u32 %v133, 6
    %v135 = vand.u32 %v133, 63
    %v136 = vsub.s32 0, %v135
    %v137 = vsel %vm131, %v136, %v135
    %vm138 = vcmp.ne.s32.totalorder %v137, 0
    %vm139 = vcmp.lt.s32.totalorder %v137, 0
    %vm140 = vmand %vm139, %vm138
    %v141 = vadd.s32 %v137, 64
    %v142 = vsel %vm140, %v141, %v137
    %vm143 = vcmp.ge.s32.totalorder %v142, 32
    %v144 = vand.u32 2147483647, %v126
    %vm145 = vcmp.le.f32.partialorder %v144, 0.7853982
    %vm146 = vcmp.lt.s32.totalorder %v126, 0
    %v147 = vand.u32 %v126, 2139095040
    %v148 = vshrl.u32 %v147, 23
    %v149 = vsub.s32 %v148, 127
    %v150 = vand.u32 2147483647, %v126
    %v151 = vand.u32 %v150, 8388607
    %v152 = vor.u32 %v151, 8388608
    %v153 = vsub.s32 0, %v152
    %v154 = vadd.s32 %v149, 1
    %vm155 = vcmp.gt.s32.totalorder %v154, 0
    %v156 = vsel %vm155, %v154, 0
    %v157 = vshrl.u32 %v156, 5
    %v158 = vand.u32 %v156, 31
    %v159 = vsub.s32 32, %v158
    %v160 = vshrl.u32 683565275, %v159
    %v161 = vshll.u32 683565275, %v158
    %v162 = vshrl.u32 2475754826, %v159
    %v163 = vor.u32 %v161, %v162
    %v164 = vshll.u32 2475754826, %v158
    %v165 = vshrl.u32 2131351028, %v159
    %v166 = vor.u32 %v164, %v165
    %v167 = vshll.u32 2131351028, %v158
    %v168 = vshrl.u32 2102212464, %v159
    %v169 = vor.u32 %v167, %v168
    %v170 = vshll.u32 2102212464, %v158
    %v171 = vshrl.u32 920167782, %v159
    %v172 = vor.u32 %v170, %v171
    %v173 = vshll.u32 920167782, %v158
    %v174 = vshrl.u32 1326507024, %v159
    %v175 = vor.u32 %v173, %v174
    %vm176 = vcmp.lt.s32.totalorder %v157, 1
    %vm177 = vcmp.lt.s32.totalorder %v157, 2
    %vm178 = vcmp.lt.s32.totalorder %v157, 3
    %vm179 = vcmp.lt.s32.totalorder %v157, 4
    %v180 = vsel %vm176, %v160, %v163
    %v181 = vsel %vm179, %v169, 2102212464
    %v182 = vsel %vm178, %v166, %v181
    %v183 = vsel %vm177, %v180, %v182
    %v184 = vsel %vm176, %v163, %v166
    %v185 = vsel %vm179, %v172, 920167782
    %v186 = vsel %vm178, %v169, %v185
    %v187 = vsel %vm177, %v184, %v186
    %v188 = vsel %vm176, %v166, %v169
    %v189 = vsel %vm179, %v175, 1326507024
    %v190 = vsel %vm178, %v172, %v189
    %v191 = vsel %vm177, %v188, %v190
    %v192 = vshll.u32 %v152, 8
    %v193 = vmul.u32.u64.compose %v192, %v191
    %v194 = vextract.low.u32 %v193
    %v195 = vextract.high.u32 %v193
    %v196 = vmul.u32.u64.compose %v192, %v187
    %v197 = vextract.low.u32 %v196
    %v198 = vextract.high.u32 %v196
    %v199 = vmul.u32 %v192, %v183
    %v200 = vadd.s32 %v195, %v197
    %vm201 = vc.u32 %v195, %v197
    %v202 = vadd.s32 %v198, 1
    %v203 = vsel %vm201, %v202, %v198
    %v204 = vadd.s32 %v199, %v203
    %v205 = vadd.s32 %v204, 536870912
    %v206 = vshrl.u32 %v205, 30
    %v207 = vshll.u32 %v206, 30
    %v208 = vsub.s32 %v204, %v207
    %vm209 = vcmp.lt.s32.totalorder %v208, 0
    %v210 = vsub.s32 0, %v208
    %v211 = vsel %vm209, %v210, %v208
    %v212 = vclz %v211
    %v213 = vsub.s32 %v212, 2
    %vm214 = vcmp.gt.s32.totalorder 0, %v213
    %v215 = vsel %vm214, 0, %v213
    %v216 = vsub.s32 32, %v215
    %v217 = vshll.u32 %v208, %v215
    %v218 = vshrl.u32 %v200, %v216
    %v219 = vor.u32 %v217, %v218
    %v220 = vsub.s32 4294967266, %v215
    %v221 = vadd.s32 %v220, 127
    %v222 = vshll.u32 %v221, 23
    %v223 = vor.u32 4788187, %v222
    %v224 = vand.u32 2147483647, %v223
    %v226 = vcvt.s32.f32 %v219
    %v227 = vmul.f32 %v226, %v224
    %v228 = vxor.u32 %v227, 2147483648
    %v229 = vsel %vm146, %v228, %v227
    %v230 = vsub.s32 4, %v206
    %v231 = vsel %vm146, %v230, %v206
    %v232 = vsel %vm145, %v126, %v229
    %v233 = vsel %vm145, 0, %v231
    %v234 = vcosq.f32.pop %v232
    %v235 = vsinq.f32.pop %v232
    %vm236 = vweird.f32 %v126
    %v237 = vadd.s32 %v233, 3
    %v238 = vand.u32 %v237, 3
    %vm239 = vcmp.lt.s32.totalorder %v238, 2
    %vm240 = vcmp.eq.s32.totalorder %v238, 0
    %v241 = vxor.u32 %v235, 2147483648
    %v242 = vsel %vm240, %v234, %v241
    %vm243 = vcmp.eq.s32.totalorder %v238, 2
    %v244 = vxor.u32 %v234, 2147483648
    %v245 = vsel %vm243, %v244, %v235
    %v246 = vsel %vm239, %v242, %v245
    %v247 = vsel %vm236, nan, %v246
    %v248 = vsel %vm143, %v247, %v126
    %249 = vst [vmem:[#allocation7] sm:$0xff] %v248
    // Predicated region
    $region22: #{tpu_custom_call.1} parent=1 // pred_check
      _
    $region23: #{tpu_custom_call.1} parent=1 // pred_check_branch
      %251 = sbr.rel (0) target = $region25
    $region24: #{tpu_custom_call.1} parent=1 // pred_region
      %s253 = ssub.s32 128, 128
      %254 = vsyncadd [#allocation4], %s253
      %s256 = sshll.u32 [#allocation7], 4
      %s257 = int_to_ptr.vmem [resolvable:$true] %s256
      %259 = dma.vmem_to_hbm [thread:$0]  %s257, 128, %s3, [#allocation4]
    $region25: #{tpu_custom_call.1} parent=1 // pred_fallthru
      _
    // Predicated region
    $region26: #{tpu_custom_call.1} parent=1 // pred_check
      _
    $region27: #{tpu_custom_call.1} parent=1 // pred_check_branch
      %261 = sbr.rel (0) target = $region29
    $region28: #{tpu_custom_call.1} parent=1 // pred_region
      %262 = dma.done [#allocation4], 128
    $region29: #{tpu_custom_call.1} parent=1 // pred_fallthru
      _
    %263 = vsyncpa [#allocation3], 1
    %264 = vsyncpa [#allocation6], 1
    %265 = vsyncpa [#allocation4], 1

</llo_original>
